<compile_context>
chip_gen: v6e
topology: v6e:2x2x1
jax: 0.10.0
libtpu: 0.0.40
codegen_flags: <defaults>
</compile_context>

<pallas_src>
import functools

import jax
import jax.numpy as jnp
from jax.experimental import pallas as pl
from jax.experimental.pallas import tpu as pltpu

_LANE = 128
# Conservative: 2x double-buffered input block + 2x output block must fit every
# generation's *default* scoped VMEM (v5e: 16 MiB) without raising limits.
_RESIDENT_VMEM_BUDGET_BYTES = 12 * 1024 * 1024
_DEFAULT_TILE_LANES = 2048  # multiple of 128; C=32 x 2048 f32 tile = 256 KiB per DMA


def _squeeze_excite_weights(avg_c1, w1t, scale, shift, w2):
    """Tiny SE MLP on VPU/XLU. avg_c1:(C,1) f32 -> x_w:(C,1) f32."""
    # h_j = sum_c w1[j,c] * avg[c]   (w1t is w1 transposed: (C, Cmid))
    h = jnp.sum(w1t * avg_c1, axis=0, keepdims=True)          # (1, Cmid)
    h = jnp.maximum(h * scale + shift, 0.0)                   # folded BN (eval) + ReLU
    y = jnp.sum(w2 * h, axis=-1, keepdims=True)               # (C, 1)
    return jax.nn.sigmoid(jax.nn.sigmoid(y))                  # double sigmoid per module


def _seb_resident_kernel(x_ref, w1t_ref, scale_ref, shift_ref, w2_ref, o_ref,
                         *, inv_hw):
    # x_ref/o_ref: (1, C, HW_pad) in native dtype; compute in f32.
    x = x_ref[0].astype(jnp.float32)                           # (C, HW_pad)
    avg = jnp.sum(x, axis=-1, keepdims=True) * inv_hw          # zero-padding safe
    x_w = _squeeze_excite_weights(avg, w1t_ref[...], scale_ref[...],
                                  shift_ref[...], w2_ref[...])
    o_ref[0] = (x * (1.0 + x_w)).astype(o_ref.dtype)           # x + x * x_w


def _seb_tiled_kernel(x_ref, w1t_ref, scale_ref, shift_ref, w2_ref, o_ref,
                      sum_ref, xw_ref, *, inv_hw):
    # grid = (N, phase, tile); phase 0 accumulates sums, phase 1 writes output.
    p = pl.program_id(1)
    t = pl.program_id(2)

    @pl.when(jnp.logical_and(p == 0, t == 0))
    def _init():
        sum_ref[...] = jnp.zeros_like(sum_ref)

    @pl.when(p == 0)
    def _accumulate():
        x = x_ref[0].astype(jnp.float32)                       # (C, T)
        sum_ref[...] += jnp.sum(x, axis=-1, keepdims=True)

    @pl.when(jnp.logical_and(p == 1, t == 0))
    def _excite():
        avg = sum_ref[...] * inv_hw
        xw_ref[...] = _squeeze_excite_weights(avg, w1t_ref[...], scale_ref[...],
                                              shift_ref[...], w2_ref[...])

    @pl.when(p == 1)
    def _scale_out():
        x = x_ref[0].astype(jnp.float32)
        o_ref[0] = (x * (1.0 + xw_ref[...])).astype(o_ref.dtype)


def _pad_lanes(x, hw_pad):
    hw = x.shape[-1]
    if hw_pad == hw:
        return x
    return jnp.pad(x, ((0, 0), (0, 0), (0, hw_pad - hw)))


def seb_forward(x_nchw, w1, gamma, beta, running_mean, running_var, w2,
                eps=1e-5, tile_lanes=None):
    """SEB forward. x_nchw: (N,C,H,W) any float dtype; output has the same dtype."""
    N, C, H, W = x_nchw.shape
    Cmid = w1.shape[0]
    HW = H * W
    dtype = x_nchw.dtype
    inv_hw = 1.0 / float(HW)

    # Fold eval-mode BatchNorm into per-channel scale/shift (f32, tiny).
    g32 = gamma.astype(jnp.float32)
    inv_std = 1.0 / jnp.sqrt(running_var.astype(jnp.float32) + eps)
    scale = (g32 * inv_std).reshape(1, Cmid)
    shift = (beta.astype(jnp.float32)
             - running_mean.astype(jnp.float32) * g32 * inv_std).reshape(1, Cmid)
    w1t = jnp.transpose(w1.astype(jnp.float32))                # (C, Cmid)
    w2f = w2.astype(jnp.float32)                               # (C, Cmid)

    weight_specs = [
        pl.BlockSpec((C, Cmid), lambda *idx: (0, 0)),          # w1 (transposed)
        pl.BlockSpec((1, Cmid), lambda *idx: (0, 0)),          # BN scale
        pl.BlockSpec((1, Cmid), lambda *idx: (0, 0)),          # BN shift
        pl.BlockSpec((C, Cmid), lambda *idx: (0, 0)),          # w2
    ]

    itemsize = jnp.dtype(dtype).itemsize
    hw_rounded = -(-HW // _LANE) * _LANE                       # lane-dense (x128)
    use_resident = (tile_lanes is None and
                    4 * C * hw_rounded * itemsize <= _RESIDENT_VMEM_BUDGET_BYTES)

    if use_resident:
        # Single pass: 1 read + 1 write of x (bandwidth-optimal for small H*W).
        HW_pad = hw_rounded
        x = _pad_lanes(x_nchw.reshape(N, C, HW), HW_pad)
        out = pl.pallas_call(
            functools.partial(_seb_resident_kernel, inv_hw=inv_hw),
            out_shape=jax.ShapeDtypeStruct((N, C, HW_pad), dtype),
            grid_spec=pltpu.PrefetchScalarGridSpec(
                num_scalar_prefetch=0,
                grid=(N,),
                in_specs=[pl.BlockSpec((1, C, HW_pad), lambda n: (n, 0, 0))]
                + weight_specs,
                out_specs=pl.BlockSpec((1, C, HW_pad), lambda n: (n, 0, 0)),
            ),
            compiler_params=pltpu.CompilerParams(
                dimension_semantics=("parallel",)),
            # NOTE: input_output_aliases={0: 0} would let the output reuse x's HBM
            # buffer when the caller can donate it; left off to avoid clobbering x.
        )(x, w1t, scale, shift, w2f)
    else:
        # Two-phase streaming kernel: VMEM footprint independent of H*W.
        T = int(tile_lanes) if tile_lanes is not None else _DEFAULT_TILE_LANES
        assert T % _LANE == 0, "tile width must be a multiple of 128 lanes"
        HW_pad = -(-HW // T) * T
        num_tiles = HW_pad // T
        x = _pad_lanes(x_nchw.reshape(N, C, HW), HW_pad)
        out = pl.pallas_call(
            functools.partial(_seb_tiled_kernel, inv_hw=inv_hw),
            out_shape=jax.ShapeDtypeStruct((N, C, HW_pad), dtype),
            grid_spec=pltpu.PrefetchScalarGridSpec(
                num_scalar_prefetch=0,
                grid=(N, 2, num_tiles),
                in_specs=[pl.BlockSpec((1, C, T), lambda n, p, t: (n, 0, t))]
                + weight_specs,
                # During phase 0 the output block index is pinned to (n,0,0) so the
                # (never-written) buffer is not flushed; phase 1 writes every tile.
                out_specs=pl.BlockSpec((1, C, T), lambda n, p, t: (n, 0, t * p)),
                scratch_shapes=[pltpu.VMEM((C, 1), jnp.float32),   # channel sums
                                pltpu.VMEM((C, 1), jnp.float32)],  # x_w
            ),
            compiler_params=pltpu.CompilerParams(
                dimension_semantics=("parallel", "arbitrary", "arbitrary")),
        )(x, w1t, scale, shift, w2f)

    if HW_pad != HW:
        out = out[:, :, :HW]
    return out.reshape(N, C, H, W)


def seb_reference(x, w1, gamma, beta, rm, rv, w2, eps=1e-5):
    # Pure-JAX reference mirroring the PyTorch forward (eval-mode BN), f32.
    x = x.astype(jnp.float32)
    x_avg = x.mean(axis=(2, 3), keepdims=True)                 # (N,C,1,1)
    a = x_avg[:, :, 0, 0]                                      # (N,C)
    h = a @ w1.T                                               # (N,Cmid)
    h = (h - rm) / jnp.sqrt(rv + eps) * gamma + beta
    h = jnp.maximum(h, 0.0)
    y = h @ w2.T                                               # (N,C)
    x_w = jax.nn.sigmoid(jax.nn.sigmoid(y))[:, :, None, None]
    return x + x * x_w


if __name__ == "__main__":
    # Small shapes consistent with the module: hidden_dim=32, factor=4.
    N, C, H, W = 2, 32, 16, 16
    factor = 4
    Cmid = C // factor

    key = jax.random.PRNGKey(0)
    k_x, k_w1, k_w2, k_g, k_b, k_rm, k_rv = jax.random.split(key, 7)

    x = jax.random.normal(k_x, (N, C, H, W), dtype=jnp.float32)
    # Conv2d 1x1 weights (kernel dims squeezed): (out_ch, in_ch)
    w1 = jax.random.normal(k_w1, (Cmid, C), dtype=jnp.float32) * 0.1
    w2 = jax.random.normal(k_w2, (C, Cmid), dtype=jnp.float32) * 0.1
    # BatchNorm2d parameters / running stats (deterministic, non-trivial)
    gamma = 1.0 + 0.1 * jax.random.normal(k_g, (Cmid,), dtype=jnp.float32)
    beta = 0.1 * jax.random.normal(k_b, (Cmid,), dtype=jnp.float32)
    running_mean = 0.1 * jax.random.normal(k_rm, (Cmid,), dtype=jnp.float32)
    running_var = 1.0 + 0.1 * jax.random.uniform(k_rv, (Cmid,), dtype=jnp.float32)

    ref = seb_reference(x, w1, gamma, beta, running_mean, running_var, w2)

    # 1) resident single-pass path, f32 I/O.
    out = jax.block_until_ready(
        seb_forward(x, w1, gamma, beta, running_mean, running_var, w2))
    assert out.shape == (N, C, H, W) and out.dtype == jnp.float32
    assert jnp.allclose(out, ref, atol=1e-5, rtol=1e-5), "resident path mismatch"

    # 2) tiled two-phase path (forced small tile so the large-HW path is exercised).
    out_tiled = jax.block_until_ready(
        seb_forward(x, w1, gamma, beta, running_mean, running_var, w2,
                    tile_lanes=128))
    assert jnp.allclose(out_tiled, ref, atol=1e-5, rtol=1e-5), "tiled path mismatch"

    # 3) native bf16 I/O (streams half the HBM traffic; accumulation stays f32).
    x_bf16 = x.astype(jnp.bfloat16)
    ref_bf16 = seb_reference(x_bf16, w1, gamma, beta, running_mean, running_var, w2)
    out_bf16 = jax.block_until_ready(
        seb_forward(x_bf16, w1, gamma, beta, running_mean, running_var, w2))
    assert out_bf16.dtype == jnp.bfloat16
    assert jnp.allclose(out_bf16.astype(jnp.float32), ref_bf16,
                        atol=3e-2, rtol=3e-2), "bf16 path mismatch"

    print("KERNEL_OK")
</pallas_src>

<mosaic_0001>
module attributes {stable_mosaic.version = 11 : i64} {
  func.func @_seb_resident_kernel(%arg0: i32, %arg1: memref<1x32x256xf32, #tpu.memory_space<vmem>>, %arg2: memref<32x8xf32, #tpu.memory_space<vmem>>, %arg3: memref<1x8xf32, #tpu.memory_space<vmem>>, %arg4: memref<1x8xf32, #tpu.memory_space<vmem>>, %arg5: memref<32x8xf32, #tpu.memory_space<vmem>>, %arg6: memref<1x32x256xf32, #tpu.memory_space<vmem>>) attributes {dimension_semantics = [#tpu.dimension_semantics<parallel>], iteration_bounds = array<i64: 2>, scalar_prefetch = 0 : i64, scratch_operands = 0 : i64, tpu.core_type = #tpu.core_type<tc>, window_params = [{transform_indices = @transform_0, window_bounds = array<i64: 1, 32, 256>}, {pipeline_mode = #tpu.pipeline_mode<synchronous>, transform_indices = @transform_1, window_bounds = array<i64: 32, 8>}, {pipeline_mode = #tpu.pipeline_mode<synchronous>, transform_indices = @transform_2, window_bounds = array<i64: 1, 8>}, {pipeline_mode = #tpu.pipeline_mode<synchronous>, transform_indices = @transform_3, window_bounds = array<i64: 1, 8>}, {pipeline_mode = #tpu.pipeline_mode<synchronous>, transform_indices = @transform_4, window_bounds = array<i64: 32, 8>}, {transform_indices = @transform_5, window_bounds = array<i64: 1, 32, 256>}]} {
    %c0 = arith.constant 0 : index
    %c0_0 = arith.constant 0 : index
    %c0_1 = arith.constant 0 : index
    %0 = vector.load %arg1[%c0, %c0_0, %c0_1] : memref<1x32x256xf32, #tpu.memory_space<vmem>>, vector<1x32x256xf32>
    %1 = vector.shape_cast %0 : vector<1x32x256xf32> to vector<32x256xf32>
    %cst = arith.constant dense<0.000000e+00> : vector<32xf32>
    %2 = vector.multi_reduction <add>, %1, %cst [1] : vector<32x256xf32> to vector<32xf32>
    %3 = vector.shape_cast %2 : vector<32xf32> to vector<32x1xf32>
    %cst_2 = arith.constant 3.906250e-03 : f32
    %4 = vector.broadcast %cst_2 : f32 to vector<32x1xf32>
    %5 = arith.mulf %3, %4 : vector<32x1xf32>
    %c0_3 = arith.constant 0 : index
    %c0_4 = arith.constant 0 : index
    %6 = vector.load %arg2[%c0_3, %c0_4] : memref<32x8xf32, #tpu.memory_space<vmem>>, vector<32x8xf32>
    %c0_5 = arith.constant 0 : index
    %c0_6 = arith.constant 0 : index
    %7 = vector.load %arg3[%c0_5, %c0_6] : memref<1x8xf32, #tpu.memory_space<vmem>>, vector<1x8xf32>
    %c0_7 = arith.constant 0 : index
    %c0_8 = arith.constant 0 : index
    %8 = vector.load %arg4[%c0_7, %c0_8] : memref<1x8xf32, #tpu.memory_space<vmem>>, vector<1x8xf32>
    %c0_9 = arith.constant 0 : index
    %c0_10 = arith.constant 0 : index
    %9 = vector.load %arg5[%c0_9, %c0_10] : memref<32x8xf32, #tpu.memory_space<vmem>>, vector<32x8xf32>
    %10 = vector.broadcast %5 : vector<32x1xf32> to vector<32x8xf32>
    %11 = arith.mulf %6, %10 : vector<32x8xf32>
    %cst_11 = arith.constant dense<0.000000e+00> : vector<8xf32>
    %12 = vector.multi_reduction <add>, %11, %cst_11 [0] : vector<32x8xf32> to vector<8xf32>
    %13 = vector.shape_cast %12 : vector<8xf32> to vector<1x8xf32>
    %14 = arith.mulf %13, %7 : vector<1x8xf32>
    %15 = arith.addf %14, %8 : vector<1x8xf32>
    %cst_12 = arith.constant 0.000000e+00 : f32
    %16 = vector.broadcast %cst_12 : f32 to vector<1x8xf32>
    %17 = arith.maximumf %15, %16 : vector<1x8xf32>
    %18 = vector.broadcast %17 : vector<1x8xf32> to vector<32x8xf32>
    %19 = arith.mulf %9, %18 : vector<32x8xf32>
    %cst_13 = arith.constant dense<0.000000e+00> : vector<32xf32>
    %20 = vector.multi_reduction <add>, %19, %cst_13 [1] : vector<32x8xf32> to vector<32xf32>
    %21 = vector.shape_cast %20 : vector<32xf32> to vector<32x1xf32>
    %22 = arith.negf %21 : vector<32x1xf32>
    %23 = math.exp %22 : vector<32x1xf32>
    %cst_14 = arith.constant 1.000000e+00 : f32
    %24 = vector.broadcast %cst_14 : f32 to vector<32x1xf32>
    %25 = arith.addf %24, %23 : vector<32x1xf32>
    %26 = arith.divf %24, %25 : vector<32x1xf32>
    %27 = arith.negf %26 : vector<32x1xf32>
    %28 = math.exp %27 : vector<32x1xf32>
    %cst_15 = arith.constant 1.000000e+00 : f32
    %29 = vector.broadcast %cst_15 : f32 to vector<32x1xf32>
    %30 = arith.addf %29, %28 : vector<32x1xf32>
    %31 = arith.divf %29, %30 : vector<32x1xf32>
    %cst_16 = arith.constant 1.000000e+00 : f32
    %32 = vector.broadcast %cst_16 : f32 to vector<32x1xf32>
    %33 = arith.addf %32, %31 : vector<32x1xf32>
    %34 = vector.broadcast %33 : vector<32x1xf32> to vector<32x256xf32>
    %35 = arith.mulf %1, %34 : vector<32x256xf32>
    %c0_17 = arith.constant 0 : index
    %c0_18 = arith.constant 0 : index
    %c0_19 = arith.constant 0 : index
    %36 = vector.load %arg6[%c0_17, %c0_18, %c0_19] : memref<1x32x256xf32, #tpu.memory_space<vmem>>, vector<1x32x256xf32>
    %37 = vector.shape_cast %36 : vector<1x32x256xf32> to vector<32x256xf32>
    %38 = vector.shape_cast %35 : vector<32x256xf32> to vector<1x32x256xf32>
    tpu.vector_store %arg6[%c0_17, %c0_18, %c0_19], %38 {strides = array<i32>} : memref<1x32x256xf32, #tpu.memory_space<vmem>>, vector<1x32x256xf32>,
    return
  }
  func.func @transform_0(%arg0: i32) -> (i32, i32, i32) {
    %c0_i32 = arith.constant 0 : i32
    %c0_i32_0 = arith.constant 0 : i32
    %c0_i32_1 = arith.constant 0 : i32
    return %arg0, %c0_i32, %c0_i32_0 : i32, i32, i32
  }
  func.func @transform_1(%arg0: i32) -> (i32, i32) {
    %c0_i32 = arith.constant 0 : i32
    %c0_i32_0 = arith.constant 0 : i32
    %c0_i32_1 = arith.constant 0 : i32
    return %c0_i32, %c0_i32_0 : i32, i32
  }
  func.func @transform_2(%arg0: i32) -> (i32, i32) {
    %c0_i32 = arith.constant 0 : i32
    %c0_i32_0 = arith.constant 0 : i32
    %c0_i32_1 = arith.constant 0 : i32
    return %c0_i32, %c0_i32_0 : i32, i32
  }
  func.func @transform_3(%arg0: i32) -> (i32, i32) {
    %c0_i32 = arith.constant 0 : i32
    %c0_i32_0 = arith.constant 0 : i32
    %c0_i32_1 = arith.constant 0 : i32
    return %c0_i32, %c0_i32_0 : i32, i32
  }
  func.func @transform_4(%arg0: i32) -> (i32, i32) {
    %c0_i32 = arith.constant 0 : i32
    %c0_i32_0 = arith.constant 0 : i32
    %c0_i32_1 = arith.constant 0 : i32
    return %c0_i32, %c0_i32_0 : i32, i32
  }
  func.func @transform_5(%arg0: i32) -> (i32, i32, i32) {
    %c0_i32 = arith.constant 0 : i32
    %c0_i32_0 = arith.constant 0 : i32
    %c0_i32_1 = arith.constant 0 : i32
    return %arg0, %c0_i32, %c0_i32_0 : i32, i32, i32
  }
}

</mosaic_0001>

<llo_original>
// kernel: tpu_custom_call.1
$region0: #{tpu_custom_call.1}
  #allocation0 [shape = 'u32[]', space=smem, size = 0x4, offset = 0x4, fixed_abs, tag = 'smem constant byte address 0x4 - core index']
  #allocation1 [shape = 'u32[144,128]{1,0:T(1,128)}', space=vmem, size = 0x12000, scoped, tag = 'internal scratch']
  %s0 = inlined_call_operand.hbm [shape: f32[2,32,256], index: 0, kind: input, shape index: {}]
  %s1 = inlined_call_operand.vmem [shape: f32[32,8], index: 1, kind: input, shape index: {}]
  %s2 = inlined_call_operand.vmem [shape: f32[1,8], index: 2, kind: input, shape index: {}]
  %s3 = inlined_call_operand.vmem [shape: f32[1,8], index: 3, kind: input, shape index: {}]
  %s4 = inlined_call_operand.vmem [shape: f32[32,8], index: 4, kind: input, shape index: {}]
  %s5 = inlined_call_operand.hbm [shape: f32[2,32,256], index: 5, kind: output, shape index: {}]
  %s6 = sld [smem:[#allocation0]]
  $region57: #{tpu_custom_call.1} parent=0
    _
  %s8 = ssub.s32 1, %s6
  %s9 = scalar_select 0, %s8, %s6
  $region1: #{tpu_custom_call.1} parent=0
    #allocation2 [shape = 'u8[65536]{0}', space=vmem, size = 0x10000, scoped, tag = 'input window, operand 0']
    #allocation3 [shape = 's32[2]{0}', space=sflag, size = 0x8, scoped, tag = 'scoped memory for tpu_custom_call.1']
    #allocation4 [shape = 's32[2]{0}', space=sflag, size = 0x8, scoped, tag = 'scoped memory for tpu_custom_call.1']
    #allocation5 [shape = 'u8[65536]{0}', space=vmem, size = 0x10000, scoped, tag = 'output window, operand 0']
    %10 = vsyncpa [#allocation3], 0
    %s11 = scalar_lea.sflag [#allocation3], 1
    %12 = vsyncpa %s11, 0
    %13 = vsyncpa [#allocation4], 0
    %s14 = scalar_lea.sflag [#allocation4], 1
    %15 = vsyncpa %s14, 0
    loop: start=0, step=1, limit=4
    $region2: #{tpu_custom_call.1} parent=1 // loop_pre_header
      _
    $region3: #{tpu_custom_call.1} parent=1 // loop_header
      %s17 = sphi 0, %s21
      %p18 = scmp.ge.s32.totalorder %s17, 4
      %s27 = sphi 0, %s29
      %s30 = sphi 0, %s27
      %s31 = sphi 0, %s30
      %s47 = sphi 0, %s31
      %s51 = sphi 0, %s51
      %s53 = sphi 0, %s51
      %s54 = sphi 0, %s53
      %s68 = sphi 0, %s54
      %s72 = sphi 0, %s72
      %s74 = sphi 0, %s72
      %s75 = sphi 0, %s74
      %s89 = sphi 0, %s75
      %s93 = sphi 0, %s93
      %s95 = sphi 0, %s93
      %s96 = sphi 0, %s95
      %s110 = sphi 0, %s96
      %s114 = sphi 0, %s114
      %s116 = sphi 0, %s114
      %s117 = sphi 0, %s116
      %s131 = sphi 0, %s117
      %s137 = sphi 0, %s139
      %s140 = sphi 0, %s137
      %s141 = sphi 0, %s140
      %s157 = sphi 0, %s141
    $region4: #{tpu_custom_call.1} parent=1 // loop_header_branch
      %20 = sbr.rel (%p18) target = $region8
    $region5: #{tpu_custom_call.1} parent=1 // loop_body
      %s22 = ssub.s32 %s17, 1
      %s23 = ssub.s32 %s17, 2
      %s24 = sadd.s32 %s17, 1
      %s25 = ssub.s32 %s17, %s24
      %p26 = scmp.eq.s32.totalorder %s25, 0
      %s28 = sadd.s32 %s27, 1
      %s29 = scalar_select %p26, %s27, %s28
      %p32 = pneg %p26
      %p33 = scmp.eq.s32.totalorder %s17, 1
      %p34 = por %p32, %p33
      %p35 = scmp.ne.s32.totalorder %s27, %s30
      %p36 = scmp.eq.s32.totalorder %s17, 0
      %p37 = por %p35, %p36
      %p38 = scmp.ne.s32.totalorder %s27, %s30
      %p39 = scmp.eq.s32.totalorder %s22, 1
      %p40 = por %p38, %p39
      %p41 = scmp.ne.s32.totalorder %s30, %s31
      %p42 = scmp.eq.s32.totalorder %s22, 0
      %p43 = por %p41, %p42
      %p44 = scmp.ne.s32.totalorder %s30, %s31
      %p45 = scmp.eq.s32.totalorder %s23, 1
      %p46 = por %p44, %p45
      %p48 = scmp.ne.s32.totalorder %s31, %s47
      %p49 = scmp.eq.s32.totalorder %s23, 0
      %p50 = por %p48, %p49
      %s52 = sadd.s32 %s51, 1
      %p55 = scmp.eq.s32.totalorder %s17, 1
      %p56 = scmp.ne.s32.totalorder %s51, %s53
      %p57 = scmp.eq.s32.totalorder %s17, 0
      %p58 = por %p56, %p57
      %p59 = scmp.ne.s32.totalorder %s51, %s53
      %p60 = scmp.eq.s32.totalorder %s22, 1
      %p61 = por %p59, %p60
      %p62 = scmp.ne.s32.totalorder %s53, %s54
      %p63 = scmp.eq.s32.totalorder %s22, 0
      %p64 = por %p62, %p63
      %p65 = scmp.ne.s32.totalorder %s53, %s54
      %p66 = scmp.eq.s32.totalorder %s23, 1
      %p67 = por %p65, %p66
      %p69 = scmp.ne.s32.totalorder %s54, %s68
      %p70 = scmp.eq.s32.totalorder %s23, 0
      %p71 = por %p69, %p70
      %s73 = sadd.s32 %s72, 1
      %p76 = scmp.eq.s32.totalorder %s17, 1
      %p77 = scmp.ne.s32.totalorder %s72, %s74
      %p78 = scmp.eq.s32.totalorder %s17, 0
      %p79 = por %p77, %p78
      %p80 = scmp.ne.s32.totalorder %s72, %s74
      %p81 = scmp.eq.s32.totalorder %s22, 1
      %p82 = por %p80, %p81
      %p83 = scmp.ne.s32.totalorder %s74, %s75
      %p84 = scmp.eq.s32.totalorder %s22, 0
      %p85 = por %p83, %p84
      %p86 = scmp.ne.s32.totalorder %s74, %s75
      %p87 = scmp.eq.s32.totalorder %s23, 1
      %p88 = por %p86, %p87
      %p90 = scmp.ne.s32.totalorder %s75, %s89
      %p91 = scmp.eq.s32.totalorder %s23, 0
      %p92 = por %p90, %p91
      %s94 = sadd.s32 %s93, 1
      %p97 = scmp.eq.s32.totalorder %s17, 1
      %p98 = scmp.ne.s32.totalorder %s93, %s95
      %p99 = scmp.eq.s32.totalorder %s17, 0
      %p100 = por %p98, %p99
      %p101 = scmp.ne.s32.totalorder %s93, %s95
      %p102 = scmp.eq.s32.totalorder %s22, 1
      %p103 = por %p101, %p102
      %p104 = scmp.ne.s32.totalorder %s95, %s96
      %p105 = scmp.eq.s32.totalorder %s22, 0
      %p106 = por %p104, %p105
      %p107 = scmp.ne.s32.totalorder %s95, %s96
      %p108 = scmp.eq.s32.totalorder %s23, 1
      %p109 = por %p107, %p108
      %p111 = scmp.ne.s32.totalorder %s96, %s110
      %p112 = scmp.eq.s32.totalorder %s23, 0
      %p113 = por %p111, %p112
      %s115 = sadd.s32 %s114, 1
      %p118 = scmp.eq.s32.totalorder %s17, 1
      %p119 = scmp.ne.s32.totalorder %s114, %s116
      %p120 = scmp.eq.s32.totalorder %s17, 0
      %p121 = por %p119, %p120
      %p122 = scmp.ne.s32.totalorder %s114, %s116
      %p123 = scmp.eq.s32.totalorder %s22, 1
      %p124 = por %p122, %p123
      %p125 = scmp.ne.s32.totalorder %s116, %s117
      %p126 = scmp.eq.s32.totalorder %s22, 0
      %p127 = por %p125, %p126
      %p128 = scmp.ne.s32.totalorder %s116, %s117
      %p129 = scmp.eq.s32.totalorder %s23, 1
      %p130 = por %p128, %p129
      %p132 = scmp.ne.s32.totalorder %s117, %s131
      %p133 = scmp.eq.s32.totalorder %s23, 0
      %p134 = por %p132, %p133
      %s135 = ssub.s32 %s17, %s24
      %p136 = scmp.eq.s32.totalorder %s135, 0
      %s138 = sadd.s32 %s137, 1
      %s139 = scalar_select %p136, %s137, %s138
      %p142 = pneg %p136
      %p143 = scmp.eq.s32.totalorder %s17, 1
      %p144 = por %p142, %p143
      %p145 = scmp.ne.s32.totalorder %s137, %s140
      %p146 = scmp.eq.s32.totalorder %s17, 0
      %p147 = por %p145, %p146
      %p148 = scmp.ne.s32.totalorder %s137, %s140
      %p149 = scmp.eq.s32.totalorder %s22, 1
      %p150 = por %p148, %p149
      %p151 = scmp.ne.s32.totalorder %s140, %s141
      %p152 = scmp.eq.s32.totalorder %s22, 0
      %p153 = por %p151, %p152
      %p154 = scmp.ne.s32.totalorder %s140, %s141
      %p155 = scmp.eq.s32.totalorder %s23, 1
      %p156 = por %p154, %p155
      %p158 = scmp.ne.s32.totalorder %s141, %s157
      %p159 = scmp.eq.s32.totalorder %s23, 0
      %p160 = por %p158, %p159
      %p161 = scmp.le.s32.totalorder 1, %s17
      %p162 = scmp.lt.s32.totalorder %s17, 3
      %p163 = pnand %p161, %p162
      %p164 = pneg %p163
      // Predicated region
      $region9: #{tpu_custom_call.1} parent=5 // pred_check
        _
      $region10: #{tpu_custom_call.1} parent=5 // pred_check_branch
        %166 = sbr.rel (%p163) target = $region12
      $region11: #{tpu_custom_call.1} parent=5 // pred_region
        %s167 = ssub.s32 %s17, 1
        // Predicated region
        $region13: #{tpu_custom_call.1} parent=11 // pred_check
          %p168 = pneg %p64
        $region14: #{tpu_custom_call.1} parent=11 // pred_check_branch
          %170 = sbr.rel (%p168) target = $region16
        $region15: #{tpu_custom_call.1} parent=11 // pred_region
          _
        $region16: #{tpu_custom_call.1} parent=11 // pred_fallthru
          _
        // Predicated region
        $region17: #{tpu_custom_call.1} parent=11 // pred_check
          %p171 = pneg %p85
        $region18: #{tpu_custom_call.1} parent=11 // pred_check_branch
          %173 = sbr.rel (%p171) target = $region20
        $region19: #{tpu_custom_call.1} parent=11 // pred_region
          _
        $region20: #{tpu_custom_call.1} parent=11 // pred_fallthru
          _
        // Predicated region
        $region21: #{tpu_custom_call.1} parent=11 // pred_check
          %p174 = pneg %p106
        $region22: #{tpu_custom_call.1} parent=11 // pred_check_branch
          %176 = sbr.rel (%p174) target = $region24
        $region23: #{tpu_custom_call.1} parent=11 // pred_region
          _
        $region24: #{tpu_custom_call.1} parent=11 // pred_fallthru
          _
        // Predicated region
        $region25: #{tpu_custom_call.1} parent=11 // pred_check
          %p177 = pneg %p127
        $region26: #{tpu_custom_call.1} parent=11 // pred_check_branch
          %179 = sbr.rel (%p177) target = $region28
        $region27: #{tpu_custom_call.1} parent=11 // pred_region
          _
        $region28: #{tpu_custom_call.1} parent=11 // pred_fallthru
          _
      $region12: #{tpu_custom_call.1} parent=5 // pred_fallthru
        _
      %p180 = scmp.lt.s32.totalorder %s17, 2
      // Predicated region
      $region29: #{tpu_custom_call.1} parent=5 // pred_check
        %p181 = pneg %p180
      $region30: #{tpu_custom_call.1} parent=5 // pred_check_branch
        %183 = sbr.rel (%p181) target = $region32
      $region31: #{tpu_custom_call.1} parent=5 // pred_region
        // Predicated region
        $region33: #{tpu_custom_call.1} parent=31 // pred_check
          %p184 = pneg %p37
        $region34: #{tpu_custom_call.1} parent=31 // pred_check_branch
          %186 = sbr.rel (%p184) target = $region36
        $region35: #{tpu_custom_call.1} parent=31 // pred_region
          %s187 = sand.u32 %s27, 1
          %s188 = scalar_lea.sflag [#allocation3], %s187
          %s189 = sand.u32 %s27, 1
          %s190 = smul.addr %s189, 64
          %s191 = scalar_lea.vmem [#allocation2], %s190
          %s193 = ssub.s32 1024, 1024
          %194 = vsyncadd %s188, %s193
          %s195 = smul.addr %s17, 8
          %s196 = smul.addr %s195, 128
          %s197 = scalar_lea.hbm %s0, %s196
          %s198 = sshll.u32 %s191, 4
          %s199 = int_to_ptr.vmem [resolvable:$true] %s198
          %204 = dma.hbm_to_vmem [thread:$0]  %s197, 1024, %s199, %s188, 256, 256, 16
        $region36: #{tpu_custom_call.1} parent=31 // pred_fallthru
          _
      $region32: #{tpu_custom_call.1} parent=5 // pred_fallthru
        _
      %p205 = scmp.le.s32.totalorder 1, %s17
      %p206 = scmp.lt.s32.totalorder %s17, 3
      %p207 = pnand %p205, %p206
      %p208 = pneg %p207
      // Predicated region
      $region37: #{tpu_custom_call.1} parent=5 // pred_check
        _
      $region38: #{tpu_custom_call.1} parent=5 // pred_check_branch
        %210 = sbr.rel (%p207) target = $region40
      $region39: #{tpu_custom_call.1} parent=5 // pred_region
        %s211 = ssub.s32 %s17, 1
        %s212 = sand.u32 %s30, 1
        %s213 = scalar_lea.sflag [#allocation3], %s212
        %s214 = sand.u32 %s30, 1
        %s215 = smul.addr %s214, 64
        %s216 = scalar_lea.vmem [#allocation2], %s215
        // Predicated region
        $region41: #{tpu_custom_call.1} parent=39 // pred_check
          %p217 = pneg %p43
        $region42: #{tpu_custom_call.1} parent=39 // pred_check_branch
          %219 = sbr.rel (%p217) target = $region44
        $region43: #{tpu_custom_call.1} parent=39 // pred_region
          %220 = dma.done %s213, 1024
        $region44: #{tpu_custom_call.1} parent=39 // pred_fallthru
          _
        %s221 = sand.u32 %s30, 1
        %s222 = scalar_lea.sflag [#allocation3], %s221
        %s223 = sand.u32 %s30, 1
        %s224 = smul.addr %s223, 64
        %s225 = scalar_lea.vmem [#allocation2], %s224
        %p226 = pneg %p43
        %p227 = pneg %p40
        %p228 = pneg %p64
        %p229 = pneg %p61
        %p230 = pneg %p85
        %p231 = pneg %p82
        %p232 = pneg %p106
        %p233 = pneg %p103
        %p234 = pneg %p127
        %p235 = pneg %p124
        %p236 = pneg %p153
        %p237 = pneg %p150
        %s238 = sand.u32 %s140, 1
        %s239 = scalar_lea.sflag [#allocation4], %s238
        %s240 = sand.u32 %s140, 1
        %s241 = smul.addr %s240, 64
        %s242 = scalar_lea.vmem [#allocation5], %s241
        %v243 = vld [vmem:[%s216] sm:$0xff]
        %v244 = vld [vmem:[%s216 + $0x8] sm:$0xff]
        %v245 = vld [vmem:[%s216 + $0x10] sm:$0xff]
        %v246 = vld [vmem:[%s216 + $0x18] sm:$0xff]
        %v247 = vld [vmem:[%s216 + $0x20] sm:$0xff]
        %v248 = vld [vmem:[%s216 + $0x28] sm:$0xff]
        %v249 = vld [vmem:[%s216 + $0x30] sm:$0xff]
        %v250 = vld [vmem:[%s216 + $0x38] sm:$0xff]
        %v251 = vadd.f32 %v243, %v244
        %252 = vadd.xlane.f32.xlu0 %v251
        %v253 = vpop.xlane.xlu0 %252
        %v254 = vadd.f32 %v245, %v246
        %255 = vadd.xlane.f32.xlu0 %v254
        %v256 = vpop.xlane.xlu0 %255
        %v257 = vadd.f32 %v247, %v248
        %258 = vadd.xlane.f32.xlu0 %v257
        %v259 = vpop.xlane.xlu0 %258
        %v260 = vadd.f32 %v249, %v250
        %261 = vadd.xlane.f32.xlu0 %v260
        %v262 = vpop.xlane.xlu0 %261
        %v263 = vmul.f32 %v253, 0.00390625
        %v264 = vmul.f32 %v256, 0.00390625
        %v265 = vmul.f32 %v259, 0.00390625
        %v266 = vmul.f32 %v262, 0.00390625
        %v267 = vld [vmem:[%s1] sm:$0xff]
        %v268 = vld [vmem:[%s1 + $0x8] sm:$0xff]
        %v269 = vld [vmem:[%s1 + $0x10] sm:$0xff]
        %v270 = vld [vmem:[%s1 + $0x18] sm:$0xff]
        %v271 = vld [vmem:[%s2] sm:$0x1]
        %v272 = vld [vmem:[%s3] sm:$0x1]
        %v273 = vld [vmem:[%s4] sm:$0xff]
        %v274 = vld [vmem:[%s4 + $0x8] sm:$0xff]
        %v275 = vld [vmem:[%s4 + $0x10] sm:$0xff]
        %v276 = vld [vmem:[%s4 + $0x18] sm:$0xff]
        %v277 = vmul.f32 %v267, %v263
        %v278 = vmul.f32 %v268, %v264
        %v279 = vmul.f32 %v269, %v265
        %v280 = vmul.f32 %v270, %v266
        %vm281 = vcmask 64512
        %v282 = vsel %vm281, %v277, 0.0
        %v283 = vsel %vm281, %v278, 0.0
        %v284 = vadd.f32 %v282, %v283
        %v285 = vsel %vm281, %v279, 0.0
        %v286 = vadd.f32 %v284, %v285
        %v287 = vsel %vm281, %v280, 0.0
        %v288 = vadd.f32 %v286, %v287
        %v289 = vrot.slane %v288, 4
        %v290 = vadd.f32 %v288, %v289
        %v291 = vrot.slane %v290, 2
        %v292 = vadd.f32 %v290, %v291
        %v293 = vrot.slane %v292, 1
        %v294 = vadd.f32 %v292, %v293
        %v295 = vmul.f32 %v294, %v271
        %v296 = vadd.f32 %v295, %v272
        %v297 = vmax.f32 %v296, 0.0
        %v298 = vlaneseq
        %v299 = vshrl.u32 %v298, 7
        %v300 = vsub.s32 0, %v299
        %v301 = vrot.slane %v297, %v300
        %v302 = vmul.f32 %v273, %v301
        %v303 = vmul.f32 %v274, %v301
        %v304 = vmul.f32 %v275, %v301
        %v305 = vmul.f32 %v276, %v301
        %v306 = vsel %vm281, %v302, 0.0
        %307 = vadd.xlane.f32.xlu0 %v306
        %v308 = vpop.xlane.xlu0 %307
        %v309 = vsel %vm281, %v303, 0.0
        %310 = vadd.xlane.f32.xlu0 %v309
        %v311 = vpop.xlane.xlu0 %310
        %v312 = vsel %vm281, %v304, 0.0
        %313 = vadd.xlane.f32.xlu0 %v312
        %v314 = vpop.xlane.xlu0 %313
        %v315 = vsel %vm281, %v305, 0.0
        %316 = vadd.xlane.f32.xlu0 %v315
        %v317 = vpop.xlane.xlu0 %316
        %v318 = vxor.u32 %v308, 2147483648
        %v319 = vxor.u32 %v311, 2147483648
        %v320 = vxor.u32 %v314, 2147483648
        %v321 = vxor.u32 %v317, 2147483648
        %v322 = vmul.f32 %v318, 1.442695
        %v323 = vpow.pop %v322
        %v324 = vmul.f32 %v319, 1.442695
        %v325 = vpow.pop %v324
        %v326 = vmul.f32 %v320, 1.442695
        %v327 = vpow.pop %v326
        %v328 = vmul.f32 %v321, 1.442695
        %v329 = vpow.pop %v328
        %v330 = vadd.f32 %v323, 1.0
        %v331 = vadd.f32 %v325, 1.0
        %v332 = vadd.f32 %v327, 1.0
        %v333 = vadd.f32 %v329, 1.0
        %v334 = vrcp.pop %v330
        %v335 = vmul.f32 1.0, %v334
        %v336 = vrcp.pop %v331
        %v337 = vmul.f32 1.0, %v336
        %v338 = vrcp.pop %v332
        %v339 = vmul.f32 1.0, %v338
        %v340 = vrcp.pop %v333
        %v341 = vmul.f32 1.0, %v340
        %v342 = vxor.u32 %v335, 2147483648
        %v343 = vxor.u32 %v337, 2147483648
        %v344 = vxor.u32 %v339, 2147483648
        %v345 = vxor.u32 %v341, 2147483648
        %v346 = vmul.f32 %v342, 1.442695
        %v347 = vpow.pop %v346
        %v348 = vmul.f32 %v343, 1.442695
        %v349 = vpow.pop %v348
        %v350 = vmul.f32 %v344, 1.442695
        %v351 = vpow.pop %v350
        %v352 = vmul.f32 %v345, 1.442695
        %v353 = vpow.pop %v352
        %v354 = vadd.f32 %v347, 1.0
        %v355 = vadd.f32 %v349, 1.0
        %v356 = vadd.f32 %v351, 1.0
        %v357 = vadd.f32 %v353, 1.0
        %v358 = vrcp.pop %v354
        %v359 = vmul.f32 1.0, %v358
        %v360 = vrcp.pop %v355
        %v361 = vmul.f32 1.0, %v360
        %v362 = vrcp.pop %v356
        %v363 = vmul.f32 1.0, %v362
        %v364 = vrcp.pop %v357
        %v365 = vmul.f32 1.0, %v364
        %v366 = vadd.f32 %v359, 1.0
        %v367 = vadd.f32 %v361, 1.0
        %v368 = vadd.f32 %v363, 1.0
        %v369 = vadd.f32 %v365, 1.0
        %v370 = vmul.f32 %v243, %v366
        %v371 = vmul.f32 %v244, %v366
        %v372 = vmul.f32 %v245, %v367
        %v373 = vmul.f32 %v246, %v367
        %v374 = vmul.f32 %v247, %v368
        %v375 = vmul.f32 %v248, %v368
        %v376 = vmul.f32 %v249, %v369
        %v377 = vmul.f32 %v250, %v369
        %378 = vst [vmem:[%s242] sm:$0xff] %v370
        %379 = vst [vmem:[%s242 + $0x8] sm:$0xff] %v371
        %380 = vst [vmem:[%s242 + $0x10] sm:$0xff] %v372
        %381 = vst [vmem:[%s242 + $0x18] sm:$0xff] %v373
        %382 = vst [vmem:[%s242 + $0x20] sm:$0xff] %v374
        %383 = vst [vmem:[%s242 + $0x28] sm:$0xff] %v375
        %384 = vst [vmem:[%s242 + $0x30] sm:$0xff] %v376
        %385 = vst [vmem:[%s242 + $0x38] sm:$0xff] %v377
        %s386 = sand.u32 %s140, 1
        %s387 = scalar_lea.sflag [#allocation4], %s386
        %s388 = sand.u32 %s140, 1
        %s389 = smul.addr %s388, 64
        %s390 = scalar_lea.vmem [#allocation5], %s389
        // Predicated region
        $region45: #{tpu_custom_call.1} parent=39 // pred_check
          %p391 = pneg %p150
        $region46: #{tpu_custom_call.1} parent=39 // pred_check_branch
          %393 = sbr.rel (%p391) target = $region48
        $region47: #{tpu_custom_call.1} parent=39 // pred_region
          %s395 = ssub.s32 1024, 1024
          %396 = vsyncadd %s387, %s395
          %s397 = smul.addr %s22, 8
          %s398 = smul.addr %s397, 128
          %s399 = scalar_lea.hbm %s5, %s398
          %s400 = sshll.u32 %s390, 4
          %s401 = int_to_ptr.vmem [resolvable:$true] %s400
          %406 = dma.vmem_to_hbm [thread:$0]  %s401, 1024, %s399, %s387, 256, 256, 16
        $region48: #{tpu_custom_call.1} parent=39 // pred_fallthru
          _
      $region40: #{tpu_custom_call.1} parent=5 // pred_fallthru
        _
      %p407 = scmp.le.s32.totalorder 2, %s17
      // Predicated region
      $region49: #{tpu_custom_call.1} parent=5 // pred_check
        %p408 = pneg %p407
      $region50: #{tpu_custom_call.1} parent=5 // pred_check_branch
        %410 = sbr.rel (%p408) target = $region52
      $region51: #{tpu_custom_call.1} parent=5 // pred_region
        %s411 = ssub.s32 %s17, 2
        // Predicated region
        $region53: #{tpu_custom_call.1} parent=51 // pred_check
          %p412 = pneg %p156
        $region54: #{tpu_custom_call.1} parent=51 // pred_check_branch
          %414 = sbr.rel (%p412) target = $region56
        $region55: #{tpu_custom_call.1} parent=51 // pred_region
          %s415 = sand.u32 %s141, 1
          %s416 = scalar_lea.sflag [#allocation4], %s415
          %s417 = sand.u32 %s141, 1
          %s418 = smul.addr %s417, 64
          %s419 = scalar_lea.vmem [#allocation5], %s418
          %420 = dma.done %s416, 1024
        $region56: #{tpu_custom_call.1} parent=51 // pred_fallthru
          _
      $region52: #{tpu_custom_call.1} parent=5 // pred_fallthru
        _
    $region6: #{tpu_custom_call.1} parent=1 // loop_footer
      %s21 = sadd.s32 1, %s17
    $region7: #{tpu_custom_call.1} parent=1 // loop_footer_branch
      %16 = sbr.rel target = $region3
    $region8: #{tpu_custom_call.1} parent=1 // loop_exit
      _
    %421 = vsyncpa [#allocation3], 1
    %s422 = scalar_lea.sflag [#allocation3], 1
    %423 = vsyncpa %s422, 1
    %424 = vsyncpa [#allocation4], 1
    %s425 = scalar_lea.sflag [#allocation4], 1
    %426 = vsyncpa %s425, 1

</llo_original>
